<compile_context>
chip_gen: v7x
topology: tpu7x:2x2x1
jax: 0.10.0
libtpu: 0.0.40
codegen_flags: <defaults>
</compile_context>

<pallas_src>
import functools

import numpy as np
import jax
import jax.numpy as jnp
from jax import lax
from jax.experimental import pallas as pl
from jax.experimental.pallas import tpu as pltpu

MAX_FIXES = 2   # static upper bound on fixes per batch element (len=0 padded)
RING = 8        # max in-flight row DMAs per grid step (semaphore ring depth)


def _pick_seq_tile(seq_pad, max_tile=64):
    """Largest multiple-of-8 divisor of seq_pad that is <= max_tile."""
    best = 8
    for cand in range(8, min(seq_pad, max_tile) + 1, 8):
        if seq_pad % cand == 0:
            best = cand
    return best


def embeddings_with_fixes_kernel(ids_ref, off_ref, len_ref, start_ref,  # SMEM (scalar prefetch)
                                 table_hbm,                             # HBM ref (pl.ANY): [V+R, H]
                                 out_ref,                               # VMEM block (1, TS, H)
                                 sems,                                  # DMA semaphore ring
                                 *, seq_orig, vocab, ring):
    b = pl.program_id(0)
    t = pl.program_id(1)
    ts = out_ref.shape[1]
    s0 = t * ts                               # first token position of this tile

    # ---- hoist per-fix scalar work out of the token loop --------------------
    # Per fix: interval [lo, hi) over sequence positions, and a base row such
    # that row(s) = base + s selects the right TI vector in the fused table.
    fix_lo, fix_hi, fix_base = [], [], []
    for f in range(MAX_FIXES):
        lo = off_ref[b, f] + 1
        emb_len = jnp.minimum(seq_orig - lo, len_ref[b, f])   # min(S-off-1, len(vec))
        fix_lo.append(lo)
        fix_hi.append(lo + emb_len)                           # empty when emb_len <= 0
        fix_base.append(vocab + start_ref[b, f] - lo)

    def resolve_row(s):
        row = ids_ref[b, s]
        for f in range(MAX_FIXES):            # later fixes win (torch loop order)
            in_fix = jnp.logical_and(s >= fix_lo[f], s < fix_hi[f])
            row = jnp.where(in_fix, fix_base[f] + s, row)
        return row

    def wait_slot(slot):
        # The wait only needs the semaphore + byte count; every row copy moves
        # the same H*itemsize bytes from the fused table, so a dummy (row 0)
        # descriptor is a valid wait for any slot.
        pltpu.make_async_copy(table_hbm.at[0], out_ref.at[0, 0], sems.at[slot]).wait()

    # ---- prologue: fill the ring (no waits) ----------------------------------
    def prologue(i, carry):
        row = resolve_row(s0 + i)
        pltpu.make_async_copy(table_hbm.at[row], out_ref.at[0, i], sems.at[i]).start()
        return carry
    lax.fori_loop(0, ring, prologue, 0, unroll=True)

    # ---- steady state: recycle ring slots, waits interleaved with issue ------
    if ts > ring:
        pow2 = (ring & (ring - 1)) == 0
        def steady(i, carry):
            row = resolve_row(s0 + i)         # SMEM reads BEFORE the .wait()
            slot = (i & (ring - 1)) if pow2 else lax.rem(i, ring)
            wait_slot(slot)                   # reclaim the slot issued RING tokens ago
            pltpu.make_async_copy(table_hbm.at[row], out_ref.at[0, i],
                                  sems.at[slot]).start()
            return carry
        lax.fori_loop(ring, ts, steady, 0, unroll=8)

    # ---- drain the ring -------------------------------------------------------
    def drain(i, carry):
        wait_slot(i)
        return carry
    lax.fori_loop(0, ring, drain, 0, unroll=True)

    # TODO(synk): coalesce each fix region into contiguous multi-row DMAs (the
    # TI rows and the output rows are both contiguous) instead of per-token rows.
    # TODO(synk): for bf16/fp16 tables, bitcast rows to uint32 views ([*, H/2])
    # so single-row DMAs stay aligned to the packed (16,128) VMEM tiling.


def embeddings_with_fixes(input_ids, weight, ti_vecs,
                          fix_offsets, fix_lens, fix_starts,
                          *, max_seq_tile=64):
    batch, seq = input_ids.shape
    vocab, hidden = weight.shape
    n_ti = ti_vecs.shape[0]
    assert hidden % 128 == 0, "hidden must be lane-aligned (multiple of 128)"

    # devices.cond_cast_unet + `.to(dtype=inputs_embeds.dtype)`: cast TI vectors
    # to the embedding dtype, then fuse them BELOW the weight table so each
    # token needs one unconditional row DMA (fix rows live at index vocab + r).
    # In a real integration this concat happens once, since `weight` is static.
    table = jnp.concatenate([weight, ti_vecs.astype(weight.dtype)], axis=0)

    # Host-side guard (review): TI rows must stay inside the packed table.
    # Skipped under jit; the default DMA bounds check still applies there.
    try:
        assert bool(jnp.all(fix_starts + fix_lens <= n_ti)), \
            "fix rows exceed the packed TI table"
        assert bool(jnp.all(fix_offsets >= 0)), "negative fix offset"
    except jax.errors.ConcretizationTypeError:
        pass

    # Pad seq to a multiple of 8 (sublane-aligned writeback) and tile it so
    # v7x's two TensorCores both get work even at batch=1.
    seq_pad = -(-seq // 8) * 8
    if seq_pad != seq:
        input_ids = jnp.pad(input_ids, ((0, 0), (0, seq_pad - seq)))
    seq_tile = _pick_seq_tile(seq_pad, max_seq_tile)
    ring = min(RING, seq_tile)

    kernel = functools.partial(embeddings_with_fixes_kernel,
                               seq_orig=seq, vocab=vocab, ring=ring)

    grid_spec = pltpu.PrefetchScalarGridSpec(
        num_scalar_prefetch=4,                 # ids, offsets, lens, starts -> SMEM
        grid=(batch, seq_pad // seq_tile),
        in_specs=[pl.BlockSpec(memory_space=pl.ANY)],   # fused table stays in HBM
        out_specs=pl.BlockSpec((1, seq_tile, hidden), lambda b, t, *_: (b, t, 0)),
        scratch_shapes=[pltpu.SemaphoreType.DMA((ring,))],
    )

    bytes_out = batch * seq_pad * hidden * jnp.dtype(weight.dtype).itemsize
    out = pl.pallas_call(
        kernel,
        out_shape=jax.ShapeDtypeStruct((batch, seq_pad, hidden), weight.dtype),
        grid_spec=grid_spec,
        compiler_params=pltpu.CompilerParams(
            # batch and seq tiles are independent -> shard across v7x's 2 TCs.
            dimension_semantics=("parallel", "parallel"),
        ),
        cost_estimate=pl.CostEstimate(
            flops=0, transcendentals=0,
            bytes_accessed=2 * bytes_out),      # rows read + output written
    )(input_ids.astype(jnp.int32),
      fix_offsets.astype(jnp.int32),
      fix_lens.astype(jnp.int32),
      fix_starts.astype(jnp.int32),
      table)

    return out[:, :seq] if seq_pad != seq else out


if __name__ == "__main__":
    # Small, layout-friendly demo shapes: hidden multiple of 128 (lane-dense
    # stores), seq multiple of 8 (f32 sublane).
    batch, seq, hidden, vocab = 2, 8, 128, 64

    key = jax.random.PRNGKey(0)
    k1, k2, k3 = jax.random.split(key, 3)
    weight = jax.random.normal(k1, (vocab, hidden), jnp.float32)   # wrapped.weight
    # Two textual-inversion embeddings packed into one table:
    #   emb A = rows [0:3], emb B = rows [3:5]
    ti_vecs = jax.random.normal(k2, (5, hidden), jnp.float32)
    input_ids = jax.random.randint(k3, (batch, seq), 0, vocab, jnp.int32)

    # batch 0: fixes = [(offset=1, emb A)]                (2nd slot = len-0 padding)
    # batch 1: fixes = [(offset=0, emb B), (offset=5, emb A -> truncated to 2 rows)]
    fix_offsets = jnp.array([[1, 0], [0, 5]], jnp.int32)
    fix_lens    = jnp.array([[3, 0], [2, 3]], jnp.int32)
    fix_starts  = jnp.array([[0, 0], [3, 0]], jnp.int32)

    out = embeddings_with_fixes(input_ids, weight, ti_vecs,
                                fix_offsets, fix_lens, fix_starts)
    out = jax.block_until_ready(out)

    # ---- pure-numpy reference of the torch forward ----
    ref = np.asarray(weight)[np.asarray(input_ids)]           # embedding gather
    ti = np.asarray(ti_vecs)
    fixes = [[(1, 3, 0)], [(0, 2, 3), (5, 3, 0)]]              # (offset, len, start)
    for b, fx in enumerate(fixes):
        for off, ln, st in fx:
            emb_len = min(seq - off - 1, ln)
            ref[b, off + 1:off + 1 + emb_len] = ti[st:st + emb_len]
    np.testing.assert_allclose(np.asarray(out), ref, atol=1e-5, rtol=1e-5)

    print("KERNEL_OK")
</pallas_src>

<mosaic_0001>
module attributes {stable_mosaic.version = 11 : i64} {
  func.func @embeddings_with_fixes_kernel(%arg0: i32, %arg1: i32, %arg2: memref<2x8xi32, #tpu.memory_space<smem>>, %arg3: memref<2x2xi32, #tpu.memory_space<smem>>, %arg4: memref<2x2xi32, #tpu.memory_space<smem>>, %arg5: memref<2x2xi32, #tpu.memory_space<smem>>, %arg6: memref<69x128xf32, #tpu.memory_space<any>>, %arg7: memref<1x8x128xf32, #tpu.memory_space<vmem>>, %arg8: memref<8x!tpu.dma_semaphore, #tpu.memory_space<semaphore_mem>>) attributes {dimension_semantics = [#tpu.dimension_semantics<parallel>, #tpu.dimension_semantics<parallel>], iteration_bounds = array<i64: 2, 1>, scalar_prefetch = 4 : i64, scratch_operands = 1 : i64, tpu.core_type = #tpu.core_type<tc>, window_params = [{}, {transform_indices = @transform_1, window_bounds = array<i64: 1, 8, 128>}]} {
    %c8_i32 = arith.constant 8 : i32
    %0 = arith.muli %arg1, %c8_i32 : i32
    %1 = arith.index_cast %arg0 : i32 to index
    %c0 = arith.constant 0 : index
    %2 = memref.load %arg3[%1, %c0] : memref<2x2xi32, #tpu.memory_space<smem>>
    %c1_i32 = arith.constant 1 : i32
    %3 = arith.addi %2, %c1_i32 : i32
    %c8_i32_0 = arith.constant 8 : i32
    %4 = arith.subi %c8_i32_0, %3 : i32
    %5 = arith.index_cast %arg0 : i32 to index
    %c0_1 = arith.constant 0 : index
    %6 = memref.load %arg4[%5, %c0_1] : memref<2x2xi32, #tpu.memory_space<smem>>
    %7 = arith.minsi %4, %6 : i32
    %8 = arith.addi %3, %7 : i32
    %9 = arith.index_cast %arg0 : i32 to index
    %c0_2 = arith.constant 0 : index
    %10 = memref.load %arg5[%9, %c0_2] : memref<2x2xi32, #tpu.memory_space<smem>>
    %c64_i32 = arith.constant 64 : i32
    %11 = arith.addi %c64_i32, %10 : i32
    %12 = arith.subi %11, %3 : i32
    %13 = arith.index_cast %arg0 : i32 to index
    %c1 = arith.constant 1 : index
    %14 = memref.load %arg3[%13, %c1] : memref<2x2xi32, #tpu.memory_space<smem>>
    %c1_i32_3 = arith.constant 1 : i32
    %15 = arith.addi %14, %c1_i32_3 : i32
    %c8_i32_4 = arith.constant 8 : i32
    %16 = arith.subi %c8_i32_4, %15 : i32
    %17 = arith.index_cast %arg0 : i32 to index
    %c1_5 = arith.constant 1 : index
    %18 = memref.load %arg4[%17, %c1_5] : memref<2x2xi32, #tpu.memory_space<smem>>
    %19 = arith.minsi %16, %18 : i32
    %20 = arith.addi %15, %19 : i32
    %21 = arith.index_cast %arg0 : i32 to index
    %c1_6 = arith.constant 1 : index
    %22 = memref.load %arg5[%21, %c1_6] : memref<2x2xi32, #tpu.memory_space<smem>>
    %c64_i32_7 = arith.constant 64 : i32
    %23 = arith.addi %c64_i32_7, %22 : i32
    %24 = arith.subi %23, %15 : i32
    %c0_i32 = arith.constant 0 : i32
    %25 = arith.addi %0, %c0_i32 : i32
    %26 = arith.index_cast %arg0 : i32 to index
    %27 = arith.index_cast %25 : i32 to index
    %28 = memref.load %arg2[%26, %27] : memref<2x8xi32, #tpu.memory_space<smem>>
    %29 = arith.cmpi sge, %25, %3 : i32
    %30 = arith.cmpi slt, %25, %8 : i32
    %31 = arith.andi %29, %30 : i1
    %32 = arith.addi %12, %25 : i32
    %33 = arith.select %31, %32, %28 : i32
    %34 = arith.cmpi sge, %25, %15 : i32
    %35 = arith.cmpi slt, %25, %20 : i32
    %36 = arith.andi %34, %35 : i1
    %37 = arith.addi %24, %25 : i32
    %38 = arith.select %36, %37, %33 : i32
    %c0_i32_8 = arith.constant 0 : i32
    %c0_i32_9 = arith.constant 0 : i32
    %39 = tpu.memref_slice %arg6[%38, %c0_i32_9] : memref<69x128xf32, #tpu.memory_space<any>> -> memref<1x128xf32, #tpu.memory_space<any>>
    %40 = tpu.memref_squeeze %39 : memref<1x128xf32, #tpu.memory_space<any>> -> memref<128xf32, #tpu.memory_space<any>>
    %c0_i32_10 = arith.constant 0 : i32
    %41 = tpu.memref_slice %arg7[%c0_i32_8, %c0_i32, %c0_i32_10] : memref<1x8x128xf32, #tpu.memory_space<vmem>> -> memref<1x1x128xf32, #tpu.memory_space<vmem>>
    %42 = tpu.memref_squeeze %41 : memref<1x1x128xf32, #tpu.memory_space<vmem>> -> memref<128xf32, #tpu.memory_space<vmem>>
    %43 = tpu.memref_slice %arg8[%c0_i32] : memref<8x!tpu.dma_semaphore, #tpu.memory_space<semaphore_mem>> -> memref<1x!tpu.dma_semaphore, #tpu.memory_space<semaphore_mem>>
    %44 = tpu.memref_squeeze %43 : memref<1x!tpu.dma_semaphore, #tpu.memory_space<semaphore_mem>> -> memref<!tpu.dma_semaphore, #tpu.memory_space<semaphore_mem>>
    tpu.enqueue_dma source(%40 : memref<128xf32, #tpu.memory_space<any>>) target(%42 : memref<128xf32, #tpu.memory_space<vmem>>) target_semaphore(%44 : memref<!tpu.dma_semaphore, #tpu.memory_space<semaphore_mem>>)
    %c1_i32_11 = arith.constant 1 : i32
    %45 = arith.addi %0, %c1_i32_11 : i32
    %46 = arith.index_cast %arg0 : i32 to index
    %47 = arith.index_cast %45 : i32 to index
    %48 = memref.load %arg2[%46, %47] : memref<2x8xi32, #tpu.memory_space<smem>>
    %49 = arith.cmpi sge, %45, %3 : i32
    %50 = arith.cmpi slt, %45, %8 : i32
    %51 = arith.andi %49, %50 : i1
    %52 = arith.addi %12, %45 : i32
    %53 = arith.select %51, %52, %48 : i32
    %54 = arith.cmpi sge, %45, %15 : i32
    %55 = arith.cmpi slt, %45, %20 : i32
    %56 = arith.andi %54, %55 : i1
    %57 = arith.addi %24, %45 : i32
    %58 = arith.select %56, %57, %53 : i32
    %c0_i32_12 = arith.constant 0 : i32
    %c0_i32_13 = arith.constant 0 : i32
    %59 = tpu.memref_slice %arg6[%58, %c0_i32_13] : memref<69x128xf32, #tpu.memory_space<any>> -> memref<1x128xf32, #tpu.memory_space<any>>
    %60 = tpu.memref_squeeze %59 : memref<1x128xf32, #tpu.memory_space<any>> -> memref<128xf32, #tpu.memory_space<any>>
    %c0_i32_14 = arith.constant 0 : i32
    %61 = tpu.memref_slice %arg7[%c0_i32_12, %c1_i32_11, %c0_i32_14] : memref<1x8x128xf32, #tpu.memory_space<vmem>> -> memref<1x1x128xf32, #tpu.memory_space<vmem>>
    %62 = tpu.memref_squeeze %61 : memref<1x1x128xf32, #tpu.memory_space<vmem>> -> memref<128xf32, #tpu.memory_space<vmem>>
    %63 = tpu.memref_slice %arg8[%c1_i32_11] : memref<8x!tpu.dma_semaphore, #tpu.memory_space<semaphore_mem>> -> memref<1x!tpu.dma_semaphore, #tpu.memory_space<semaphore_mem>>
    %64 = tpu.memref_squeeze %63 : memref<1x!tpu.dma_semaphore, #tpu.memory_space<semaphore_mem>> -> memref<!tpu.dma_semaphore, #tpu.memory_space<semaphore_mem>>
    tpu.enqueue_dma source(%60 : memref<128xf32, #tpu.memory_space<any>>) target(%62 : memref<128xf32, #tpu.memory_space<vmem>>) target_semaphore(%64 : memref<!tpu.dma_semaphore, #tpu.memory_space<semaphore_mem>>)
    %c2_i32 = arith.constant 2 : i32
    %65 = arith.addi %0, %c2_i32 : i32
    %66 = arith.index_cast %arg0 : i32 to index
    %67 = arith.index_cast %65 : i32 to index
    %68 = memref.load %arg2[%66, %67] : memref<2x8xi32, #tpu.memory_space<smem>>
    %69 = arith.cmpi sge, %65, %3 : i32
    %70 = arith.cmpi slt, %65, %8 : i32
    %71 = arith.andi %69, %70 : i1
    %72 = arith.addi %12, %65 : i32
    %73 = arith.select %71, %72, %68 : i32
    %74 = arith.cmpi sge, %65, %15 : i32
    %75 = arith.cmpi slt, %65, %20 : i32
    %76 = arith.andi %74, %75 : i1
    %77 = arith.addi %24, %65 : i32
    %78 = arith.select %76, %77, %73 : i32
    %c0_i32_15 = arith.constant 0 : i32
    %c0_i32_16 = arith.constant 0 : i32
    %79 = tpu.memref_slice %arg6[%78, %c0_i32_16] : memref<69x128xf32, #tpu.memory_space<any>> -> memref<1x128xf32, #tpu.memory_space<any>>
    %80 = tpu.memref_squeeze %79 : memref<1x128xf32, #tpu.memory_space<any>> -> memref<128xf32, #tpu.memory_space<any>>
    %c0_i32_17 = arith.constant 0 : i32
    %81 = tpu.memref_slice %arg7[%c0_i32_15, %c2_i32, %c0_i32_17] : memref<1x8x128xf32, #tpu.memory_space<vmem>> -> memref<1x1x128xf32, #tpu.memory_space<vmem>>
    %82 = tpu.memref_squeeze %81 : memref<1x1x128xf32, #tpu.memory_space<vmem>> -> memref<128xf32, #tpu.memory_space<vmem>>
    %83 = tpu.memref_slice %arg8[%c2_i32] : memref<8x!tpu.dma_semaphore, #tpu.memory_space<semaphore_mem>> -> memref<1x!tpu.dma_semaphore, #tpu.memory_space<semaphore_mem>>
    %84 = tpu.memref_squeeze %83 : memref<1x!tpu.dma_semaphore, #tpu.memory_space<semaphore_mem>> -> memref<!tpu.dma_semaphore, #tpu.memory_space<semaphore_mem>>
    tpu.enqueue_dma source(%80 : memref<128xf32, #tpu.memory_space<any>>) target(%82 : memref<128xf32, #tpu.memory_space<vmem>>) target_semaphore(%84 : memref<!tpu.dma_semaphore, #tpu.memory_space<semaphore_mem>>)
    %c3_i32 = arith.constant 3 : i32
    %85 = arith.addi %0, %c3_i32 : i32
    %86 = arith.index_cast %arg0 : i32 to index
    %87 = arith.index_cast %85 : i32 to index
    %88 = memref.load %arg2[%86, %87] : memref<2x8xi32, #tpu.memory_space<smem>>
    %89 = arith.cmpi sge, %85, %3 : i32
    %90 = arith.cmpi slt, %85, %8 : i32
    %91 = arith.andi %89, %90 : i1
    %92 = arith.addi %12, %85 : i32
    %93 = arith.select %91, %92, %88 : i32
    %94 = arith.cmpi sge, %85, %15 : i32
    %95 = arith.cmpi slt, %85, %20 : i32
    %96 = arith.andi %94, %95 : i1
    %97 = arith.addi %24, %85 : i32
    %98 = arith.select %96, %97, %93 : i32
    %c0_i32_18 = arith.constant 0 : i32
    %c0_i32_19 = arith.constant 0 : i32
    %99 = tpu.memref_slice %arg6[%98, %c0_i32_19] : memref<69x128xf32, #tpu.memory_space<any>> -> memref<1x128xf32, #tpu.memory_space<any>>
    %100 = tpu.memref_squeeze %99 : memref<1x128xf32, #tpu.memory_space<any>> -> memref<128xf32, #tpu.memory_space<any>>
    %c0_i32_20 = arith.constant 0 : i32
    %101 = tpu.memref_slice %arg7[%c0_i32_18, %c3_i32, %c0_i32_20] : memref<1x8x128xf32, #tpu.memory_space<vmem>> -> memref<1x1x128xf32, #tpu.memory_space<vmem>>
    %102 = tpu.memref_squeeze %101 : memref<1x1x128xf32, #tpu.memory_space<vmem>> -> memref<128xf32, #tpu.memory_space<vmem>>
    %103 = tpu.memref_slice %arg8[%c3_i32] : memref<8x!tpu.dma_semaphore, #tpu.memory_space<semaphore_mem>> -> memref<1x!tpu.dma_semaphore, #tpu.memory_space<semaphore_mem>>
    %104 = tpu.memref_squeeze %103 : memref<1x!tpu.dma_semaphore, #tpu.memory_space<semaphore_mem>> -> memref<!tpu.dma_semaphore, #tpu.memory_space<semaphore_mem>>
    tpu.enqueue_dma source(%100 : memref<128xf32, #tpu.memory_space<any>>) target(%102 : memref<128xf32, #tpu.memory_space<vmem>>) target_semaphore(%104 : memref<!tpu.dma_semaphore, #tpu.memory_space<semaphore_mem>>)
    %c4_i32 = arith.constant 4 : i32
    %105 = arith.addi %0, %c4_i32 : i32
    %106 = arith.index_cast %arg0 : i32 to index
    %107 = arith.index_cast %105 : i32 to index
    %108 = memref.load %arg2[%106, %107] : memref<2x8xi32, #tpu.memory_space<smem>>
    %109 = arith.cmpi sge, %105, %3 : i32
    %110 = arith.cmpi slt, %105, %8 : i32
    %111 = arith.andi %109, %110 : i1
    %112 = arith.addi %12, %105 : i32
    %113 = arith.select %111, %112, %108 : i32
    %114 = arith.cmpi sge, %105, %15 : i32
    %115 = arith.cmpi slt, %105, %20 : i32
    %116 = arith.andi %114, %115 : i1
    %117 = arith.addi %24, %105 : i32
    %118 = arith.select %116, %117, %113 : i32
    %c0_i32_21 = arith.constant 0 : i32
    %c0_i32_22 = arith.constant 0 : i32
    %119 = tpu.memref_slice %arg6[%118, %c0_i32_22] : memref<69x128xf32, #tpu.memory_space<any>> -> memref<1x128xf32, #tpu.memory_space<any>>
    %120 = tpu.memref_squeeze %119 : memref<1x128xf32, #tpu.memory_space<any>> -> memref<128xf32, #tpu.memory_space<any>>
    %c0_i32_23 = arith.constant 0 : i32
    %121 = tpu.memref_slice %arg7[%c0_i32_21, %c4_i32, %c0_i32_23] : memref<1x8x128xf32, #tpu.memory_space<vmem>> -> memref<1x1x128xf32, #tpu.memory_space<vmem>>
    %122 = tpu.memref_squeeze %121 : memref<1x1x128xf32, #tpu.memory_space<vmem>> -> memref<128xf32, #tpu.memory_space<vmem>>
    %123 = tpu.memref_slice %arg8[%c4_i32] : memref<8x!tpu.dma_semaphore, #tpu.memory_space<semaphore_mem>> -> memref<1x!tpu.dma_semaphore, #tpu.memory_space<semaphore_mem>>
    %124 = tpu.memref_squeeze %123 : memref<1x!tpu.dma_semaphore, #tpu.memory_space<semaphore_mem>> -> memref<!tpu.dma_semaphore, #tpu.memory_space<semaphore_mem>>
    tpu.enqueue_dma source(%120 : memref<128xf32, #tpu.memory_space<any>>) target(%122 : memref<128xf32, #tpu.memory_space<vmem>>) target_semaphore(%124 : memref<!tpu.dma_semaphore, #tpu.memory_space<semaphore_mem>>)
    %c5_i32 = arith.constant 5 : i32
    %125 = arith.addi %0, %c5_i32 : i32
    %126 = arith.index_cast %arg0 : i32 to index
    %127 = arith.index_cast %125 : i32 to index
    %128 = memref.load %arg2[%126, %127] : memref<2x8xi32, #tpu.memory_space<smem>>
    %129 = arith.cmpi sge, %125, %3 : i32
    %130 = arith.cmpi slt, %125, %8 : i32
    %131 = arith.andi %129, %130 : i1
    %132 = arith.addi %12, %125 : i32
    %133 = arith.select %131, %132, %128 : i32
    %134 = arith.cmpi sge, %125, %15 : i32
    %135 = arith.cmpi slt, %125, %20 : i32
    %136 = arith.andi %134, %135 : i1
    %137 = arith.addi %24, %125 : i32
    %138 = arith.select %136, %137, %133 : i32
    %c0_i32_24 = arith.constant 0 : i32
    %c0_i32_25 = arith.constant 0 : i32
    %139 = tpu.memref_slice %arg6[%138, %c0_i32_25] : memref<69x128xf32, #tpu.memory_space<any>> -> memref<1x128xf32, #tpu.memory_space<any>>
    %140 = tpu.memref_squeeze %139 : memref<1x128xf32, #tpu.memory_space<any>> -> memref<128xf32, #tpu.memory_space<any>>
    %c0_i32_26 = arith.constant 0 : i32
    %141 = tpu.memref_slice %arg7[%c0_i32_24, %c5_i32, %c0_i32_26] : memref<1x8x128xf32, #tpu.memory_space<vmem>> -> memref<1x1x128xf32, #tpu.memory_space<vmem>>
    %142 = tpu.memref_squeeze %141 : memref<1x1x128xf32, #tpu.memory_space<vmem>> -> memref<128xf32, #tpu.memory_space<vmem>>
    %143 = tpu.memref_slice %arg8[%c5_i32] : memref<8x!tpu.dma_semaphore, #tpu.memory_space<semaphore_mem>> -> memref<1x!tpu.dma_semaphore, #tpu.memory_space<semaphore_mem>>
    %144 = tpu.memref_squeeze %143 : memref<1x!tpu.dma_semaphore, #tpu.memory_space<semaphore_mem>> -> memref<!tpu.dma_semaphore, #tpu.memory_space<semaphore_mem>>
    tpu.enqueue_dma source(%140 : memref<128xf32, #tpu.memory_space<any>>) target(%142 : memref<128xf32, #tpu.memory_space<vmem>>) target_semaphore(%144 : memref<!tpu.dma_semaphore, #tpu.memory_space<semaphore_mem>>)
    %c6_i32 = arith.constant 6 : i32
    %145 = arith.addi %0, %c6_i32 : i32
    %146 = arith.index_cast %arg0 : i32 to index
    %147 = arith.index_cast %145 : i32 to index
    %148 = memref.load %arg2[%146, %147] : memref<2x8xi32, #tpu.memory_space<smem>>
    %149 = arith.cmpi sge, %145, %3 : i32
    %150 = arith.cmpi slt, %145, %8 : i32
    %151 = arith.andi %149, %150 : i1
    %152 = arith.addi %12, %145 : i32
    %153 = arith.select %151, %152, %148 : i32
    %154 = arith.cmpi sge, %145, %15 : i32
    %155 = arith.cmpi slt, %145, %20 : i32
    %156 = arith.andi %154, %155 : i1
    %157 = arith.addi %24, %145 : i32
    %158 = arith.select %156, %157, %153 : i32
    %c0_i32_27 = arith.constant 0 : i32
    %c0_i32_28 = arith.constant 0 : i32
    %159 = tpu.memref_slice %arg6[%158, %c0_i32_28] : memref<69x128xf32, #tpu.memory_space<any>> -> memref<1x128xf32, #tpu.memory_space<any>>
    %160 = tpu.memref_squeeze %159 : memref<1x128xf32, #tpu.memory_space<any>> -> memref<128xf32, #tpu.memory_space<any>>
    %c0_i32_29 = arith.constant 0 : i32
    %161 = tpu.memref_slice %arg7[%c0_i32_27, %c6_i32, %c0_i32_29] : memref<1x8x128xf32, #tpu.memory_space<vmem>> -> memref<1x1x128xf32, #tpu.memory_space<vmem>>
    %162 = tpu.memref_squeeze %161 : memref<1x1x128xf32, #tpu.memory_space<vmem>> -> memref<128xf32, #tpu.memory_space<vmem>>
    %163 = tpu.memref_slice %arg8[%c6_i32] : memref<8x!tpu.dma_semaphore, #tpu.memory_space<semaphore_mem>> -> memref<1x!tpu.dma_semaphore, #tpu.memory_space<semaphore_mem>>
    %164 = tpu.memref_squeeze %163 : memref<1x!tpu.dma_semaphore, #tpu.memory_space<semaphore_mem>> -> memref<!tpu.dma_semaphore, #tpu.memory_space<semaphore_mem>>
    tpu.enqueue_dma source(%160 : memref<128xf32, #tpu.memory_space<any>>) target(%162 : memref<128xf32, #tpu.memory_space<vmem>>) target_semaphore(%164 : memref<!tpu.dma_semaphore, #tpu.memory_space<semaphore_mem>>)
    %c7_i32 = arith.constant 7 : i32
    %165 = arith.addi %0, %c7_i32 : i32
    %166 = arith.index_cast %arg0 : i32 to index
    %167 = arith.index_cast %165 : i32 to index
    %168 = memref.load %arg2[%166, %167] : memref<2x8xi32, #tpu.memory_space<smem>>
    %169 = arith.cmpi sge, %165, %3 : i32
    %170 = arith.cmpi slt, %165, %8 : i32
    %171 = arith.andi %169, %170 : i1
    %172 = arith.addi %12, %165 : i32
    %173 = arith.select %171, %172, %168 : i32
    %174 = arith.cmpi sge, %165, %15 : i32
    %175 = arith.cmpi slt, %165, %20 : i32
    %176 = arith.andi %174, %175 : i1
    %177 = arith.addi %24, %165 : i32
    %178 = arith.select %176, %177, %173 : i32
    %c0_i32_30 = arith.constant 0 : i32
    %c0_i32_31 = arith.constant 0 : i32
    %179 = tpu.memref_slice %arg6[%178, %c0_i32_31] : memref<69x128xf32, #tpu.memory_space<any>> -> memref<1x128xf32, #tpu.memory_space<any>>
    %180 = tpu.memref_squeeze %179 : memref<1x128xf32, #tpu.memory_space<any>> -> memref<128xf32, #tpu.memory_space<any>>
    %c0_i32_32 = arith.constant 0 : i32
    %181 = tpu.memref_slice %arg7[%c0_i32_30, %c7_i32, %c0_i32_32] : memref<1x8x128xf32, #tpu.memory_space<vmem>> -> memref<1x1x128xf32, #tpu.memory_space<vmem>>
    %182 = tpu.memref_squeeze %181 : memref<1x1x128xf32, #tpu.memory_space<vmem>> -> memref<128xf32, #tpu.memory_space<vmem>>
    %183 = tpu.memref_slice %arg8[%c7_i32] : memref<8x!tpu.dma_semaphore, #tpu.memory_space<semaphore_mem>> -> memref<1x!tpu.dma_semaphore, #tpu.memory_space<semaphore_mem>>
    %184 = tpu.memref_squeeze %183 : memref<1x!tpu.dma_semaphore, #tpu.memory_space<semaphore_mem>> -> memref<!tpu.dma_semaphore, #tpu.memory_space<semaphore_mem>>
    tpu.enqueue_dma source(%180 : memref<128xf32, #tpu.memory_space<any>>) target(%182 : memref<128xf32, #tpu.memory_space<vmem>>) target_semaphore(%184 : memref<!tpu.dma_semaphore, #tpu.memory_space<semaphore_mem>>)
    %c8_i32_33 = arith.constant 8 : i32
    %c0_i32_34 = arith.constant 0 : i32
    %c0_i32_35 = arith.constant 0 : i32
    %c0_i32_36 = arith.constant 0 : i32
    %c0_i32_37 = arith.constant 0 : i32
    %c0_i32_38 = arith.constant 0 : i32
    %185 = tpu.memref_slice %arg6[%c0_i32_35, %c0_i32_38] : memref<69x128xf32, #tpu.memory_space<any>> -> memref<1x128xf32, #tpu.memory_space<any>>
    %186 = tpu.memref_squeeze %185 : memref<1x128xf32, #tpu.memory_space<any>> -> memref<128xf32, #tpu.memory_space<any>>
    %c0_i32_39 = arith.constant 0 : i32
    %187 = tpu.memref_slice %arg7[%c0_i32_36, %c0_i32_37, %c0_i32_39] : memref<1x8x128xf32, #tpu.memory_space<vmem>> -> memref<1x1x128xf32, #tpu.memory_space<vmem>>
    %188 = tpu.memref_squeeze %187 : memref<1x1x128xf32, #tpu.memory_space<vmem>> -> memref<128xf32, #tpu.memory_space<vmem>>
    %189 = tpu.memref_slice %arg8[%c0_i32_34] : memref<8x!tpu.dma_semaphore, #tpu.memory_space<semaphore_mem>> -> memref<1x!tpu.dma_semaphore, #tpu.memory_space<semaphore_mem>>
    %190 = tpu.memref_squeeze %189 : memref<1x!tpu.dma_semaphore, #tpu.memory_space<semaphore_mem>> -> memref<!tpu.dma_semaphore, #tpu.memory_space<semaphore_mem>>
    tpu.wait_dma2 semaphore(%190 : memref<!tpu.dma_semaphore, #tpu.memory_space<semaphore_mem>>) src(%186 : memref<128xf32, #tpu.memory_space<any>>) dst(%188 : memref<128xf32, #tpu.memory_space<vmem>>)
    %c1_i32_40 = arith.constant 1 : i32
    %c0_i32_41 = arith.constant 0 : i32
    %c0_i32_42 = arith.constant 0 : i32
    %c0_i32_43 = arith.constant 0 : i32
    %c0_i32_44 = arith.constant 0 : i32
    %191 = tpu.memref_slice %arg6[%c0_i32_41, %c0_i32_44] : memref<69x128xf32, #tpu.memory_space<any>> -> memref<1x128xf32, #tpu.memory_space<any>>
    %192 = tpu.memref_squeeze %191 : memref<1x128xf32, #tpu.memory_space<any>> -> memref<128xf32, #tpu.memory_space<any>>
    %c0_i32_45 = arith.constant 0 : i32
    %193 = tpu.memref_slice %arg7[%c0_i32_42, %c0_i32_43, %c0_i32_45] : memref<1x8x128xf32, #tpu.memory_space<vmem>> -> memref<1x1x128xf32, #tpu.memory_space<vmem>>
    %194 = tpu.memref_squeeze %193 : memref<1x1x128xf32, #tpu.memory_space<vmem>> -> memref<128xf32, #tpu.memory_space<vmem>>
    %195 = tpu.memref_slice %arg8[%c1_i32_40] : memref<8x!tpu.dma_semaphore, #tpu.memory_space<semaphore_mem>> -> memref<1x!tpu.dma_semaphore, #tpu.memory_space<semaphore_mem>>
    %196 = tpu.memref_squeeze %195 : memref<1x!tpu.dma_semaphore, #tpu.memory_space<semaphore_mem>> -> memref<!tpu.dma_semaphore, #tpu.memory_space<semaphore_mem>>
    tpu.wait_dma2 semaphore(%196 : memref<!tpu.dma_semaphore, #tpu.memory_space<semaphore_mem>>) src(%192 : memref<128xf32, #tpu.memory_space<any>>) dst(%194 : memref<128xf32, #tpu.memory_space<vmem>>)
    %c2_i32_46 = arith.constant 2 : i32
    %c0_i32_47 = arith.constant 0 : i32
    %c0_i32_48 = arith.constant 0 : i32
    %c0_i32_49 = arith.constant 0 : i32
    %c0_i32_50 = arith.constant 0 : i32
    %197 = tpu.memref_slice %arg6[%c0_i32_47, %c0_i32_50] : memref<69x128xf32, #tpu.memory_space<any>> -> memref<1x128xf32, #tpu.memory_space<any>>
    %198 = tpu.memref_squeeze %197 : memref<1x128xf32, #tpu.memory_space<any>> -> memref<128xf32, #tpu.memory_space<any>>
    %c0_i32_51 = arith.constant 0 : i32
    %199 = tpu.memref_slice %arg7[%c0_i32_48, %c0_i32_49, %c0_i32_51] : memref<1x8x128xf32, #tpu.memory_space<vmem>> -> memref<1x1x128xf32, #tpu.memory_space<vmem>>
    %200 = tpu.memref_squeeze %199 : memref<1x1x128xf32, #tpu.memory_space<vmem>> -> memref<128xf32, #tpu.memory_space<vmem>>
    %201 = tpu.memref_slice %arg8[%c2_i32_46] : memref<8x!tpu.dma_semaphore, #tpu.memory_space<semaphore_mem>> -> memref<1x!tpu.dma_semaphore, #tpu.memory_space<semaphore_mem>>
    %202 = tpu.memref_squeeze %201 : memref<1x!tpu.dma_semaphore, #tpu.memory_space<semaphore_mem>> -> memref<!tpu.dma_semaphore, #tpu.memory_space<semaphore_mem>>
    tpu.wait_dma2 semaphore(%202 : memref<!tpu.dma_semaphore, #tpu.memory_space<semaphore_mem>>) src(%198 : memref<128xf32, #tpu.memory_space<any>>) dst(%200 : memref<128xf32, #tpu.memory_space<vmem>>)
    %c3_i32_52 = arith.constant 3 : i32
    %c0_i32_53 = arith.constant 0 : i32
    %c0_i32_54 = arith.constant 0 : i32
    %c0_i32_55 = arith.constant 0 : i32
    %c0_i32_56 = arith.constant 0 : i32
    %203 = tpu.memref_slice %arg6[%c0_i32_53, %c0_i32_56] : memref<69x128xf32, #tpu.memory_space<any>> -> memref<1x128xf32, #tpu.memory_space<any>>
    %204 = tpu.memref_squeeze %203 : memref<1x128xf32, #tpu.memory_space<any>> -> memref<128xf32, #tpu.memory_space<any>>
    %c0_i32_57 = arith.constant 0 : i32
    %205 = tpu.memref_slice %arg7[%c0_i32_54, %c0_i32_55, %c0_i32_57] : memref<1x8x128xf32, #tpu.memory_space<vmem>> -> memref<1x1x128xf32, #tpu.memory_space<vmem>>
    %206 = tpu.memref_squeeze %205 : memref<1x1x128xf32, #tpu.memory_space<vmem>> -> memref<128xf32, #tpu.memory_space<vmem>>
    %207 = tpu.memref_slice %arg8[%c3_i32_52] : memref<8x!tpu.dma_semaphore, #tpu.memory_space<semaphore_mem>> -> memref<1x!tpu.dma_semaphore, #tpu.memory_space<semaphore_mem>>
    %208 = tpu.memref_squeeze %207 : memref<1x!tpu.dma_semaphore, #tpu.memory_space<semaphore_mem>> -> memref<!tpu.dma_semaphore, #tpu.memory_space<semaphore_mem>>
    tpu.wait_dma2 semaphore(%208 : memref<!tpu.dma_semaphore, #tpu.memory_space<semaphore_mem>>) src(%204 : memref<128xf32, #tpu.memory_space<any>>) dst(%206 : memref<128xf32, #tpu.memory_space<vmem>>)
    %c4_i32_58 = arith.constant 4 : i32
    %c0_i32_59 = arith.constant 0 : i32
    %c0_i32_60 = arith.constant 0 : i32
    %c0_i32_61 = arith.constant 0 : i32
    %c0_i32_62 = arith.constant 0 : i32
    %209 = tpu.memref_slice %arg6[%c0_i32_59, %c0_i32_62] : memref<69x128xf32, #tpu.memory_space<any>> -> memref<1x128xf32, #tpu.memory_space<any>>
    %210 = tpu.memref_squeeze %209 : memref<1x128xf32, #tpu.memory_space<any>> -> memref<128xf32, #tpu.memory_space<any>>
    %c0_i32_63 = arith.constant 0 : i32
    %211 = tpu.memref_slice %arg7[%c0_i32_60, %c0_i32_61, %c0_i32_63] : memref<1x8x128xf32, #tpu.memory_space<vmem>> -> memref<1x1x128xf32, #tpu.memory_space<vmem>>
    %212 = tpu.memref_squeeze %211 : memref<1x1x128xf32, #tpu.memory_space<vmem>> -> memref<128xf32, #tpu.memory_space<vmem>>
    %213 = tpu.memref_slice %arg8[%c4_i32_58] : memref<8x!tpu.dma_semaphore, #tpu.memory_space<semaphore_mem>> -> memref<1x!tpu.dma_semaphore, #tpu.memory_space<semaphore_mem>>
    %214 = tpu.memref_squeeze %213 : memref<1x!tpu.dma_semaphore, #tpu.memory_space<semaphore_mem>> -> memref<!tpu.dma_semaphore, #tpu.memory_space<semaphore_mem>>
    tpu.wait_dma2 semaphore(%214 : memref<!tpu.dma_semaphore, #tpu.memory_space<semaphore_mem>>) src(%210 : memref<128xf32, #tpu.memory_space<any>>) dst(%212 : memref<128xf32, #tpu.memory_space<vmem>>)
    %c5_i32_64 = arith.constant 5 : i32
    %c0_i32_65 = arith.constant 0 : i32
    %c0_i32_66 = arith.constant 0 : i32
    %c0_i32_67 = arith.constant 0 : i32
    %c0_i32_68 = arith.constant 0 : i32
    %215 = tpu.memref_slice %arg6[%c0_i32_65, %c0_i32_68] : memref<69x128xf32, #tpu.memory_space<any>> -> memref<1x128xf32, #tpu.memory_space<any>>
    %216 = tpu.memref_squeeze %215 : memref<1x128xf32, #tpu.memory_space<any>> -> memref<128xf32, #tpu.memory_space<any>>
    %c0_i32_69 = arith.constant 0 : i32
    %217 = tpu.memref_slice %arg7[%c0_i32_66, %c0_i32_67, %c0_i32_69] : memref<1x8x128xf32, #tpu.memory_space<vmem>> -> memref<1x1x128xf32, #tpu.memory_space<vmem>>
    %218 = tpu.memref_squeeze %217 : memref<1x1x128xf32, #tpu.memory_space<vmem>> -> memref<128xf32, #tpu.memory_space<vmem>>
    %219 = tpu.memref_slice %arg8[%c5_i32_64] : memref<8x!tpu.dma_semaphore, #tpu.memory_space<semaphore_mem>> -> memref<1x!tpu.dma_semaphore, #tpu.memory_space<semaphore_mem>>
    %220 = tpu.memref_squeeze %219 : memref<1x!tpu.dma_semaphore, #tpu.memory_space<semaphore_mem>> -> memref<!tpu.dma_semaphore, #tpu.memory_space<semaphore_mem>>
    tpu.wait_dma2 semaphore(%220 : memref<!tpu.dma_semaphore, #tpu.memory_space<semaphore_mem>>) src(%216 : memref<128xf32, #tpu.memory_space<any>>) dst(%218 : memref<128xf32, #tpu.memory_space<vmem>>)
    %c6_i32_70 = arith.constant 6 : i32
    %c0_i32_71 = arith.constant 0 : i32
    %c0_i32_72 = arith.constant 0 : i32
    %c0_i32_73 = arith.constant 0 : i32
    %c0_i32_74 = arith.constant 0 : i32
    %221 = tpu.memref_slice %arg6[%c0_i32_71, %c0_i32_74] : memref<69x128xf32, #tpu.memory_space<any>> -> memref<1x128xf32, #tpu.memory_space<any>>
    %222 = tpu.memref_squeeze %221 : memref<1x128xf32, #tpu.memory_space<any>> -> memref<128xf32, #tpu.memory_space<any>>
    %c0_i32_75 = arith.constant 0 : i32
    %223 = tpu.memref_slice %arg7[%c0_i32_72, %c0_i32_73, %c0_i32_75] : memref<1x8x128xf32, #tpu.memory_space<vmem>> -> memref<1x1x128xf32, #tpu.memory_space<vmem>>
    %224 = tpu.memref_squeeze %223 : memref<1x1x128xf32, #tpu.memory_space<vmem>> -> memref<128xf32, #tpu.memory_space<vmem>>
    %225 = tpu.memref_slice %arg8[%c6_i32_70] : memref<8x!tpu.dma_semaphore, #tpu.memory_space<semaphore_mem>> -> memref<1x!tpu.dma_semaphore, #tpu.memory_space<semaphore_mem>>
    %226 = tpu.memref_squeeze %225 : memref<1x!tpu.dma_semaphore, #tpu.memory_space<semaphore_mem>> -> memref<!tpu.dma_semaphore, #tpu.memory_space<semaphore_mem>>
    tpu.wait_dma2 semaphore(%226 : memref<!tpu.dma_semaphore, #tpu.memory_space<semaphore_mem>>) src(%222 : memref<128xf32, #tpu.memory_space<any>>) dst(%224 : memref<128xf32, #tpu.memory_space<vmem>>)
    %c7_i32_76 = arith.constant 7 : i32
    %c0_i32_77 = arith.constant 0 : i32
    %c0_i32_78 = arith.constant 0 : i32
    %c0_i32_79 = arith.constant 0 : i32
    %c0_i32_80 = arith.constant 0 : i32
    %227 = tpu.memref_slice %arg6[%c0_i32_77, %c0_i32_80] : memref<69x128xf32, #tpu.memory_space<any>> -> memref<1x128xf32, #tpu.memory_space<any>>
    %228 = tpu.memref_squeeze %227 : memref<1x128xf32, #tpu.memory_space<any>> -> memref<128xf32, #tpu.memory_space<any>>
    %c0_i32_81 = arith.constant 0 : i32
    %229 = tpu.memref_slice %arg7[%c0_i32_78, %c0_i32_79, %c0_i32_81] : memref<1x8x128xf32, #tpu.memory_space<vmem>> -> memref<1x1x128xf32, #tpu.memory_space<vmem>>
    %230 = tpu.memref_squeeze %229 : memref<1x1x128xf32, #tpu.memory_space<vmem>> -> memref<128xf32, #tpu.memory_space<vmem>>
    %231 = tpu.memref_slice %arg8[%c7_i32_76] : memref<8x!tpu.dma_semaphore, #tpu.memory_space<semaphore_mem>> -> memref<1x!tpu.dma_semaphore, #tpu.memory_space<semaphore_mem>>
    %232 = tpu.memref_squeeze %231 : memref<1x!tpu.dma_semaphore, #tpu.memory_space<semaphore_mem>> -> memref<!tpu.dma_semaphore, #tpu.memory_space<semaphore_mem>>
    tpu.wait_dma2 semaphore(%232 : memref<!tpu.dma_semaphore, #tpu.memory_space<semaphore_mem>>) src(%228 : memref<128xf32, #tpu.memory_space<any>>) dst(%230 : memref<128xf32, #tpu.memory_space<vmem>>)
    %c8_i32_82 = arith.constant 8 : i32
    return
  }
  func.func @transform_1(%arg0: i32, %arg1: i32, %arg2: memref<2x8xi32, #tpu.memory_space<smem>>, %arg3: memref<2x2xi32, #tpu.memory_space<smem>>, %arg4: memref<2x2xi32, #tpu.memory_space<smem>>, %arg5: memref<2x2xi32, #tpu.memory_space<smem>>) -> (i32, i32, i32) {
    %c0_i32 = arith.constant 0 : i32
    %c0_i32_0 = arith.constant 0 : i32
    return %arg0, %arg1, %c0_i32 : i32, i32, i32
  }
}

</mosaic_0001>

<llo_original>
// kernel: tpu_custom_call.1
$region0: #{tpu_custom_call.1}
  #allocation0 [shape = 'u32[]', space=smem, size = 0x4, offset = 0x4, fixed_abs, tag = 'smem constant byte address 0x4 - core index']
  #allocation1 [shape = 'u32[144,128]{1,0:T(1,128)}', space=vmem, size = 0x12000, scoped, tag = 'internal scratch']
  #allocation2 [shape = 's32[8]{0}', space=sflag, size = 0x20, scoped, tag = 'scratch operand']
  #allocation3 [shape = 's32[1]{0}', space=sflag, size = 0x4, scoped, tag = 'scoped memory for tpu_custom_call.1']
  #allocation4 [shape = 'u8[1024]{0}', space=smem, size = 0x400, scoped, tag = 'prefetched SMEM operand 0']
  #allocation5 [shape = 'u8[1024]{0}', space=smem, size = 0x400, scoped, tag = 'prefetched SMEM operand 1']
  #allocation6 [shape = 'u8[1024]{0}', space=smem, size = 0x400, scoped, tag = 'prefetched SMEM operand 2']
  #allocation7 [shape = 'u8[1024]{0}', space=smem, size = 0x400, scoped, tag = 'prefetched SMEM operand 3']
  #allocation10 [shape = 's32[]', space=sflag, size = 0x4, offset = 0, fixed_abs, tag = 'sflag constant byte address 0x0 - dummy sync flag']
  #allocation11 [shape = 's32[]', space=sflag, size = 0x4, offset = 0, fixed_abs, tag = 'sflag constant byte address 0x0 - dummy sync flag']
  #allocation12 [shape = 'u32[]', space=smem, size = 0x4, offset = 0x44, fixed_abs, tag = 'smem constant byte address 0x44 - assertion arg 0']
  #allocation13 [shape = 'u32[]', space=smem, size = 0x4, offset = 0x48, fixed_abs, tag = 'smem constant byte address 0x48 - assertion arg 1']
  #allocation14 [shape = 's32[]', space=sflag, size = 0x4, offset = 0, fixed_abs, tag = 'sflag constant byte address 0x0 - dummy sync flag']
  #allocation15 [shape = 's32[]', space=sflag, size = 0x4, offset = 0, fixed_abs, tag = 'sflag constant byte address 0x0 - dummy sync flag']
  #allocation16 [shape = 's32[]', space=sflag, size = 0x4, offset = 0, fixed_abs, tag = 'sflag constant byte address 0x0 - dummy sync flag']
  #allocation17 [shape = 's32[]', space=sflag, size = 0x4, offset = 0, fixed_abs, tag = 'sflag constant byte address 0x0 - dummy sync flag']
  #allocation18 [shape = 's32[]', space=sflag, size = 0x4, offset = 0, fixed_abs, tag = 'sflag constant byte address 0x0 - dummy sync flag']
  #allocation19 [shape = 's32[]', space=sflag, size = 0x4, offset = 0, fixed_abs, tag = 'sflag constant byte address 0x0 - dummy sync flag']
  #allocation20 [shape = 's32[]', space=sflag, size = 0x4, offset = 0, fixed_abs, tag = 'sflag constant byte address 0x0 - dummy sync flag']
  #allocation21 [shape = 's32[]', space=sflag, size = 0x4, offset = 0, fixed_abs, tag = 'sflag constant byte address 0x0 - dummy sync flag']
  #allocation22 [shape = 's32[]', space=sflag, size = 0x4, offset = 0, fixed_abs, tag = 'sflag constant byte address 0x0 - dummy sync flag']
  #allocation23 [shape = 's32[]', space=sflag, size = 0x4, offset = 0, fixed_abs, tag = 'sflag constant byte address 0x0 - dummy sync flag']
  #allocation24 [shape = 's32[]', space=sflag, size = 0x4, offset = 0, fixed_abs, tag = 'sflag constant byte address 0x0 - dummy sync flag']
  #allocation25 [shape = 's32[]', space=sflag, size = 0x4, offset = 0, fixed_abs, tag = 'sflag constant byte address 0x0 - dummy sync flag']
  #allocation26 [shape = 's32[]', space=sflag, size = 0x4, offset = 0, fixed_abs, tag = 'sflag constant byte address 0x0 - dummy sync flag']
  #allocation27 [shape = 's32[]', space=sflag, size = 0x4, offset = 0, fixed_abs, tag = 'sflag constant byte address 0x0 - dummy sync flag']
  %s0 = inlined_call_operand.hbm [shape: s32[2,8], index: 0, kind: input, shape index: {}]
  %s1 = inlined_call_operand.vmem [shape: s32[2,2], index: 1, kind: input, shape index: {}]
  %s2 = inlined_call_operand.vmem [shape: s32[2,2], index: 2, kind: input, shape index: {}]
  %s3 = inlined_call_operand.vmem [shape: s32[2,2], index: 3, kind: input, shape index: {}]
  %s4 = inlined_call_operand.hbm [shape: f32[69,128], index: 4, kind: input, shape index: {}]
  %s5 = inlined_call_operand.hbm [shape: f32[2,8,128], index: 5, kind: output, shape index: {}]
  %s6 = sld [smem:[#allocation0]]
  $region57: #{tpu_custom_call.1} parent=0
    _
  %s8 = ssub.s32 1, %s6
  %s9 = scalar_select 0, %s8, %s6
  %11 = dma.hbm_to_smem %s0, 32, [#allocation4], [#allocation3]
  %s12 = sshll.u32 %s1, 4
  %s13 = int_to_ptr.vmem [resolvable:$true] %s12
  %15 = dma.vmem_to_smem %s13, 32, [#allocation5], [#allocation3]
  %s16 = sshll.u32 %s2, 4
  %s17 = int_to_ptr.vmem [resolvable:$true] %s16
  %19 = dma.vmem_to_smem %s17, 32, [#allocation6], [#allocation3]
  %s20 = sshll.u32 %s3, 4
  %s21 = int_to_ptr.vmem [resolvable:$true] %s20
  %23 = dma.vmem_to_smem %s21, 32, [#allocation7], [#allocation3]
  %24 = dma.done [#allocation3], 128
  %25 = sfence
  $region1: #{tpu_custom_call.1} parent=0
    #allocation8 [shape = 'u8[8192]{0}', space=vmem, size = 0x2000, scoped, tag = 'output window, operand 0']
    #allocation9 [shape = 's32[2]{0}', space=sflag, size = 0x8, scoped, tag = 'scoped memory for tpu_custom_call.1']
    %26 = vsyncpa [#allocation9], 0
    %s27 = scalar_lea.sflag [#allocation9], 1
    %28 = vsyncpa %s27, 0
    loop: start=0, step=1, limit=3
    $region2: #{tpu_custom_call.1} parent=1 // loop_pre_header
      _
    $region3: #{tpu_custom_call.1} parent=1 // loop_header
      %s30 = sphi 0, %s34
      %p31 = scmp.ge.s32.totalorder %s30, 3
      %s36 = sphi 0, %s46
      %s37 = sphi 0, %s42
      %s38 = sphi 0, %s36
      %s39 = sphi 0, %s37
      %s51 = sphi 0, %s53
      %s54 = sphi 0, %s51
      %s64 = sphi 0, %s54
    $region4: #{tpu_custom_call.1} parent=1 // loop_header_branch
      %33 = sbr.rel (%p31) target = $region8
    $region5: #{tpu_custom_call.1} parent=1 // loop_body
      %s35 = ssub.s32 %s30, 1
      %s40 = sadd.s32 1, %s37
      %p41 = scmp.ge.s32.totalorder %s40, 1
      %s42 = scalar_select %p41, 0, %s40
      %s43 = sadd.s32 1, %s36
      %s44 = scalar_select %p41, %s43, %s36
      %p45 = scmp.ge.s32.totalorder %s44, 2
      %s46 = scalar_select %p45, 0, %s44
      %s47 = ssub.s32 %s36, %s46
      %s48 = ssub.s32 %s37, %s42
      %s49 = sor.u32 %s47, %s48
      %p50 = scmp.eq.s32.totalorder %s49, 0
      %s52 = sadd.s32 %s51, 1
      %s53 = scalar_select %p50, %s51, %s52
      %p55 = pneg %p50
      %p56 = scmp.eq.s32.totalorder %s30, 1
      %p57 = por %p55, %p56
      %p58 = scmp.ne.s32.totalorder %s51, %s54
      %p59 = scmp.eq.s32.totalorder %s30, 0
      %p60 = por %p58, %p59
      %p61 = scmp.ne.s32.totalorder %s51, %s54
      %p62 = scmp.eq.s32.totalorder %s35, 1
      %p63 = por %p61, %p62
      %p65 = scmp.ne.s32.totalorder %s54, %s64
      %p66 = scmp.eq.s32.totalorder %s35, 0
      %p67 = por %p65, %p66
      %p68 = scmp.lt.s32.totalorder %s30, 2
      // Predicated region
      $region9: #{tpu_custom_call.1} parent=5 // pred_check
        %p69 = pneg %p68
      $region10: #{tpu_custom_call.1} parent=5 // pred_check_branch
        %71 = sbr.rel (%p69) target = $region12
      $region11: #{tpu_custom_call.1} parent=5 // pred_region
        %p72 = pneg %p60
        %p73 = pneg %p57
        %s74 = sand.u32 %s51, 1
        %s75 = scalar_lea.sflag [#allocation9], %s74
        %s76 = sand.u32 %s51, 1
        %s77 = smul.addr %s76, 8
        %s78 = scalar_lea.vmem [#allocation8], %s77
        %s79 = smul.u32 %s37, 8
        %s80 = smul.u32 %s36, 128
        %s81 = sld [smem:[#allocation5 + %s80]]
        %s82 = sadd.s32 %s81, 1
        %s83 = ssub.s32 7, %s81
        %s84 = sld [smem:[#allocation6 + %s80]]
        %p85 = scmp.lt.s32.totalorder %s83, %s84
        %s86 = scalar_select %p85, %s83, %s84
        %s87 = sadd.s32 %s82, %s86
        %s88 = sld [smem:[#allocation7 + %s80]]
        %s89 = sadd.s32 %s88, 64
        %s90 = ssub.s32 %s89, %s82
        %s91 = sadd.s32 %s80, 1
        %s92 = sld [smem:[#allocation5 + %s91]]
        %s93 = sadd.s32 %s92, 1
        %s94 = ssub.s32 7, %s92
        %s95 = sld [smem:[#allocation6 + %s91]]
        %p96 = scmp.lt.s32.totalorder %s94, %s95
        %s97 = scalar_select %p96, %s94, %s95
        %s98 = sadd.s32 %s93, %s97
        %s99 = sld [smem:[#allocation7 + %s91]]
        %s100 = sadd.s32 %s99, 64
        %s101 = ssub.s32 %s100, %s93
        %s102 = sshra.s32 %s79, 7
        %s103 = sand.u32 %s79, 127
        %s104 = sadd.s32 %s102, %s36
        %s105 = smul.u32 %s104, 128
        %s106 = sshra.s32 %s79, 7
        %s107 = sand.u32 %s79, 127
        %s108 = sadd.s32 %s105, %s107
        %s109 = sld [smem:[#allocation4 + %s108]]
        %p110 = scmp.ge.s32.totalorder %s79, %s82
        %p111 = scmp.lt.s32.totalorder %s79, %s87
        %p112 = pnand %p110, %p111
        %p113 = pneg %p112
        %s114 = sadd.s32 %s90, %s79
        %s115 = scalar_select %p113, %s114, %s109
        %p116 = scmp.ge.s32.totalorder %s79, %s93
        %p117 = scmp.lt.s32.totalorder %s79, %s98
        %p118 = pnand %p116, %p117
        %p119 = pneg %p118
        %s120 = sadd.s32 %s101, %s79
        %s121 = scalar_select %p119, %s120, %s115
        %s122 = smul.addr %s121, 16
        %s123 = scalar_lea.hbm %s4, %s122
        // Predicated region
        $region13: #{tpu_custom_call.1} parent=11 // pred_check
          _
        $region14: #{tpu_custom_call.1} parent=11 // pred_check_branch
          %125 = sbr.rel target = $region16
        $region15: #{tpu_custom_call.1} parent=11 // pred_region
          %126 = sst [smem:[#allocation12]] [#allocation11]
          %127 = sst [smem:[#allocation13]] [#allocation10]
        $region16: #{tpu_custom_call.1} parent=11 // pred_fallthru
          _
        %129 = shalt.err (0)
        %s131 = sshll.u32 %s78, 4
        %s132 = int_to_ptr.vmem [resolvable:$true] %s131
        %134 = dma.hbm_to_vmem [thread:$0]  %s123, 16, %s132, [#allocation2]
        %s135 = sadd.s32 %s79, 1
        %s136 = sshra.s32 %s135, 7
        %s137 = sand.u32 %s135, 127
        %s138 = sadd.s32 %s136, %s36
        %s139 = smul.u32 %s138, 128
        %s140 = sshra.s32 %s135, 7
        %s141 = sand.u32 %s135, 127
        %s142 = sadd.s32 %s139, %s141
        %s143 = sld [smem:[#allocation4 + %s142]]
        %p144 = scmp.ge.s32.totalorder %s135, %s82
        %p145 = scmp.lt.s32.totalorder %s135, %s87
        %p146 = pnand %p144, %p145
        %p147 = pneg %p146
        %s148 = sadd.s32 %s90, %s135
        %s149 = scalar_select %p147, %s148, %s143
        %p150 = scmp.ge.s32.totalorder %s135, %s93
        %p151 = scmp.lt.s32.totalorder %s135, %s98
        %p152 = pnand %p150, %p151
        %p153 = pneg %p152
        %s154 = sadd.s32 %s101, %s135
        %s155 = scalar_select %p153, %s154, %s149
        %s156 = smul.addr %s155, 16
        %s157 = scalar_lea.hbm %s4, %s156
        %s158 = scalar_lea.vmem %s78, 1 [#allocation8]
        %s159 = scalar_lea.sflag [#allocation2], 1
        // Predicated region
        $region17: #{tpu_custom_call.1} parent=11 // pred_check
          _
        $region18: #{tpu_custom_call.1} parent=11 // pred_check_branch
          %161 = sbr.rel target = $region20
        $region19: #{tpu_custom_call.1} parent=11 // pred_region
          %162 = sst [smem:[#allocation12]] [#allocation15]
          %163 = sst [smem:[#allocation13]] [#allocation14]
        $region20: #{tpu_custom_call.1} parent=11 // pred_fallthru
          _
        %165 = shalt.err (0)
        %s167 = sshll.u32 %s158, 4
        %s168 = int_to_ptr.vmem [resolvable:$true] %s167
        %170 = dma.hbm_to_vmem [thread:$0]  %s157, 16, %s168, %s159
        %s171 = sadd.s32 %s79, 2
        %s172 = sshra.s32 %s171, 7
        %s173 = sand.u32 %s171, 127
        %s174 = sadd.s32 %s172, %s36
        %s175 = smul.u32 %s174, 128
        %s176 = sshra.s32 %s171, 7
        %s177 = sand.u32 %s171, 127
        %s178 = sadd.s32 %s175, %s177
        %s179 = sld [smem:[#allocation4 + %s178]]
        %p180 = scmp.ge.s32.totalorder %s171, %s82
        %p181 = scmp.lt.s32.totalorder %s171, %s87
        %p182 = pnand %p180, %p181
        %p183 = pneg %p182
        %s184 = sadd.s32 %s90, %s171
        %s185 = scalar_select %p183, %s184, %s179
        %p186 = scmp.ge.s32.totalorder %s171, %s93
        %p187 = scmp.lt.s32.totalorder %s171, %s98
        %p188 = pnand %p186, %p187
        %p189 = pneg %p188
        %s190 = sadd.s32 %s101, %s171
        %s191 = scalar_select %p189, %s190, %s185
        %s192 = smul.addr %s191, 16
        %s193 = scalar_lea.hbm %s4, %s192
        %s194 = scalar_lea.vmem %s78, 2 [#allocation8]
        %s195 = scalar_lea.sflag [#allocation2], 2
        // Predicated region
        $region21: #{tpu_custom_call.1} parent=11 // pred_check
          _
        $region22: #{tpu_custom_call.1} parent=11 // pred_check_branch
          %197 = sbr.rel target = $region24
        $region23: #{tpu_custom_call.1} parent=11 // pred_region
          %198 = sst [smem:[#allocation12]] [#allocation17]
          %199 = sst [smem:[#allocation13]] [#allocation16]
        $region24: #{tpu_custom_call.1} parent=11 // pred_fallthru
          _
        %201 = shalt.err (0)
        %s203 = sshll.u32 %s194, 4
        %s204 = int_to_ptr.vmem [resolvable:$true] %s203
        %206 = dma.hbm_to_vmem [thread:$0]  %s193, 16, %s204, %s195
        %s207 = sadd.s32 %s79, 3
        %s208 = sshra.s32 %s207, 7
        %s209 = sand.u32 %s207, 127
        %s210 = sadd.s32 %s208, %s36
        %s211 = smul.u32 %s210, 128
        %s212 = sshra.s32 %s207, 7
        %s213 = sand.u32 %s207, 127
        %s214 = sadd.s32 %s211, %s213
        %s215 = sld [smem:[#allocation4 + %s214]]
        %p216 = scmp.ge.s32.totalorder %s207, %s82
        %p217 = scmp.lt.s32.totalorder %s207, %s87
        %p218 = pnand %p216, %p217
        %p219 = pneg %p218
        %s220 = sadd.s32 %s90, %s207
        %s221 = scalar_select %p219, %s220, %s215
        %p222 = scmp.ge.s32.totalorder %s207, %s93
        %p223 = scmp.lt.s32.totalorder %s207, %s98
        %p224 = pnand %p222, %p223
        %p225 = pneg %p224
        %s226 = sadd.s32 %s101, %s207
        %s227 = scalar_select %p225, %s226, %s221
        %s228 = smul.addr %s227, 16
        %s229 = scalar_lea.hbm %s4, %s228
        %s230 = scalar_lea.vmem %s78, 3 [#allocation8]
        %s231 = scalar_lea.sflag [#allocation2], 3
        // Predicated region
        $region25: #{tpu_custom_call.1} parent=11 // pred_check
          _
        $region26: #{tpu_custom_call.1} parent=11 // pred_check_branch
          %233 = sbr.rel target = $region28
        $region27: #{tpu_custom_call.1} parent=11 // pred_region
          %234 = sst [smem:[#allocation12]] [#allocation19]
          %235 = sst [smem:[#allocation13]] [#allocation18]
        $region28: #{tpu_custom_call.1} parent=11 // pred_fallthru
          _
        %237 = shalt.err (0)
        %s239 = sshll.u32 %s230, 4
        %s240 = int_to_ptr.vmem [resolvable:$true] %s239
        %242 = dma.hbm_to_vmem [thread:$0]  %s229, 16, %s240, %s231
        %s243 = sadd.s32 %s79, 4
        %s244 = sshra.s32 %s243, 7
        %s245 = sand.u32 %s243, 127
        %s246 = sadd.s32 %s244, %s36
        %s247 = smul.u32 %s246, 128
        %s248 = sshra.s32 %s243, 7
        %s249 = sand.u32 %s243, 127
        %s250 = sadd.s32 %s247, %s249
        %s251 = sld [smem:[#allocation4 + %s250]]
        %p252 = scmp.ge.s32.totalorder %s243, %s82
        %p253 = scmp.lt.s32.totalorder %s243, %s87
        %p254 = pnand %p252, %p253
        %p255 = pneg %p254
        %s256 = sadd.s32 %s90, %s243
        %s257 = scalar_select %p255, %s256, %s251
        %p258 = scmp.ge.s32.totalorder %s243, %s93
        %p259 = scmp.lt.s32.totalorder %s243, %s98
        %p260 = pnand %p258, %p259
        %p261 = pneg %p260
        %s262 = sadd.s32 %s101, %s243
        %s263 = scalar_select %p261, %s262, %s257
        %s264 = smul.addr %s263, 16
        %s265 = scalar_lea.hbm %s4, %s264
        %s266 = scalar_lea.vmem %s78, 4 [#allocation8]
        %s267 = scalar_lea.sflag [#allocation2], 4
        // Predicated region
        $region29: #{tpu_custom_call.1} parent=11 // pred_check
          _
        $region30: #{tpu_custom_call.1} parent=11 // pred_check_branch
          %269 = sbr.rel target = $region32
        $region31: #{tpu_custom_call.1} parent=11 // pred_region
          %270 = sst [smem:[#allocation12]] [#allocation21]
          %271 = sst [smem:[#allocation13]] [#allocation20]
        $region32: #{tpu_custom_call.1} parent=11 // pred_fallthru
          _
        %273 = shalt.err (0)
        %s275 = sshll.u32 %s266, 4
        %s276 = int_to_ptr.vmem [resolvable:$true] %s275
        %278 = dma.hbm_to_vmem [thread:$0]  %s265, 16, %s276, %s267
        %s279 = sadd.s32 %s79, 5
        %s280 = sshra.s32 %s279, 7
        %s281 = sand.u32 %s279, 127
        %s282 = sadd.s32 %s280, %s36
        %s283 = smul.u32 %s282, 128
        %s284 = sshra.s32 %s279, 7
        %s285 = sand.u32 %s279, 127
        %s286 = sadd.s32 %s283, %s285
        %s287 = sld [smem:[#allocation4 + %s286]]
        %p288 = scmp.ge.s32.totalorder %s279, %s82
        %p289 = scmp.lt.s32.totalorder %s279, %s87
        %p290 = pnand %p288, %p289
        %p291 = pneg %p290
        %s292 = sadd.s32 %s90, %s279
        %s293 = scalar_select %p291, %s292, %s287
        %p294 = scmp.ge.s32.totalorder %s279, %s93
        %p295 = scmp.lt.s32.totalorder %s279, %s98
        %p296 = pnand %p294, %p295
        %p297 = pneg %p296
        %s298 = sadd.s32 %s101, %s279
        %s299 = scalar_select %p297, %s298, %s293
        %s300 = smul.addr %s299, 16
        %s301 = scalar_lea.hbm %s4, %s300
        %s302 = scalar_lea.vmem %s78, 5 [#allocation8]
        %s303 = scalar_lea.sflag [#allocation2], 5
        // Predicated region
        $region33: #{tpu_custom_call.1} parent=11 // pred_check
          _
        $region34: #{tpu_custom_call.1} parent=11 // pred_check_branch
          %305 = sbr.rel target = $region36
        $region35: #{tpu_custom_call.1} parent=11 // pred_region
          %306 = sst [smem:[#allocation12]] [#allocation23]
          %307 = sst [smem:[#allocation13]] [#allocation22]
        $region36: #{tpu_custom_call.1} parent=11 // pred_fallthru
          _
        %309 = shalt.err (0)
        %s311 = sshll.u32 %s302, 4
        %s312 = int_to_ptr.vmem [resolvable:$true] %s311
        %314 = dma.hbm_to_vmem [thread:$0]  %s301, 16, %s312, %s303
        %s315 = sadd.s32 %s79, 6
        %s316 = sshra.s32 %s315, 7
        %s317 = sand.u32 %s315, 127
        %s318 = sadd.s32 %s316, %s36
        %s319 = smul.u32 %s318, 128
        %s320 = sshra.s32 %s315, 7
        %s321 = sand.u32 %s315, 127
        %s322 = sadd.s32 %s319, %s321
        %s323 = sld [smem:[#allocation4 + %s322]]
        %p324 = scmp.ge.s32.totalorder %s315, %s82
        %p325 = scmp.lt.s32.totalorder %s315, %s87
        %p326 = pnand %p324, %p325
        %p327 = pneg %p326
        %s328 = sadd.s32 %s90, %s315
        %s329 = scalar_select %p327, %s328, %s323
        %p330 = scmp.ge.s32.totalorder %s315, %s93
        %p331 = scmp.lt.s32.totalorder %s315, %s98
        %p332 = pnand %p330, %p331
        %p333 = pneg %p332
        %s334 = sadd.s32 %s101, %s315
        %s335 = scalar_select %p333, %s334, %s329
        %s336 = smul.addr %s335, 16
        %s337 = scalar_lea.hbm %s4, %s336
        %s338 = scalar_lea.vmem %s78, 6 [#allocation8]
        %s339 = scalar_lea.sflag [#allocation2], 6
        // Predicated region
        $region37: #{tpu_custom_call.1} parent=11 // pred_check
          _
        $region38: #{tpu_custom_call.1} parent=11 // pred_check_branch
          %341 = sbr.rel target = $region40
        $region39: #{tpu_custom_call.1} parent=11 // pred_region
          %342 = sst [smem:[#allocation12]] [#allocation25]
          %343 = sst [smem:[#allocation13]] [#allocation24]
        $region40: #{tpu_custom_call.1} parent=11 // pred_fallthru
          _
        %345 = shalt.err (0)
        %s347 = sshll.u32 %s338, 4
        %s348 = int_to_ptr.vmem [resolvable:$true] %s347
        %350 = dma.hbm_to_vmem [thread:$0]  %s337, 16, %s348, %s339
        %s351 = sadd.s32 %s79, 7
        %s352 = sshra.s32 %s351, 7
        %s353 = sand.u32 %s351, 127
        %s354 = sadd.s32 %s352, %s36
        %s355 = smul.u32 %s354, 128
        %s356 = sshra.s32 %s351, 7
        %s357 = sand.u32 %s351, 127
        %s358 = sadd.s32 %s355, %s357
        %s359 = sld [smem:[#allocation4 + %s358]]
        %p360 = scmp.ge.s32.totalorder %s351, %s82
        %p361 = scmp.lt.s32.totalorder %s351, %s87
        %p362 = pnand %p360, %p361
        %p363 = pneg %p362
        %s364 = sadd.s32 %s90, %s351
        %s365 = scalar_select %p363, %s364, %s359
        %p366 = scmp.ge.s32.totalorder %s351, %s93
        %p367 = scmp.lt.s32.totalorder %s351, %s98
        %p368 = pnand %p366, %p367
        %p369 = pneg %p368
        %s370 = sadd.s32 %s101, %s351
        %s371 = scalar_select %p369, %s370, %s365
        %s372 = smul.addr %s371, 16
        %s373 = scalar_lea.hbm %s4, %s372
        %s374 = scalar_lea.vmem %s78, 7 [#allocation8]
        %s375 = scalar_lea.sflag [#allocation2], 7
        // Predicated region
        $region41: #{tpu_custom_call.1} parent=11 // pred_check
          _
        $region42: #{tpu_custom_call.1} parent=11 // pred_check_branch
          %377 = sbr.rel target = $region44
        $region43: #{tpu_custom_call.1} parent=11 // pred_region
          %378 = sst [smem:[#allocation12]] [#allocation27]
          %379 = sst [smem:[#allocation13]] [#allocation26]
        $region44: #{tpu_custom_call.1} parent=11 // pred_fallthru
          _
        %381 = shalt.err (0)
        %s383 = sshll.u32 %s374, 4
        %s384 = int_to_ptr.vmem [resolvable:$true] %s383
        %386 = dma.hbm_to_vmem [thread:$0]  %s373, 16, %s384, %s375
        %388 = dma.done [#allocation2], 16
        %390 = dma.done %s159, 16
        %392 = dma.done %s195, 16
        %394 = dma.done %s231, 16
        %396 = dma.done %s267, 16
        %398 = dma.done %s303, 16
        %400 = dma.done %s339, 16
        %402 = dma.done %s375, 16
        %s403 = sand.u32 %s51, 1
        %s404 = scalar_lea.sflag [#allocation9], %s403
        %s405 = sand.u32 %s51, 1
        %s406 = smul.addr %s405, 8
        %s407 = scalar_lea.vmem [#allocation8], %s406
        // Predicated region
        $region45: #{tpu_custom_call.1} parent=11 // pred_check
          %p408 = pneg %p57
        $region46: #{tpu_custom_call.1} parent=11 // pred_check_branch
          %410 = sbr.rel (%p408) target = $region48
        $region47: #{tpu_custom_call.1} parent=11 // pred_region
          %s412 = ssub.s32 128, 128
          %413 = vsyncadd %s404, %s412
          %s414 = sadd.s32 %s37, %s36
          %s415 = smul.addr %s414, 128
          %s416 = scalar_lea.hbm %s5, %s415
          %s418 = sshll.u32 %s407, 4
          %s419 = int_to_ptr.vmem [resolvable:$true] %s418
          %421 = dma.vmem_to_hbm [thread:$0]  %s419, 128, %s416, %s404
        $region48: #{tpu_custom_call.1} parent=11 // pred_fallthru
          _
      $region12: #{tpu_custom_call.1} parent=5 // pred_fallthru
        _
      %p422 = scmp.le.s32.totalorder 1, %s30
      // Predicated region
      $region49: #{tpu_custom_call.1} parent=5 // pred_check
        %p423 = pneg %p422
      $region50: #{tpu_custom_call.1} parent=5 // pred_check_branch
        %425 = sbr.rel (%p423) target = $region52
      $region51: #{tpu_custom_call.1} parent=5 // pred_region
        %s426 = ssub.s32 %s30, 1
        // Predicated region
        $region53: #{tpu_custom_call.1} parent=51 // pred_check
          %p427 = pneg %p63
        $region54: #{tpu_custom_call.1} parent=51 // pred_check_branch
          %429 = sbr.rel (%p427) target = $region56
        $region55: #{tpu_custom_call.1} parent=51 // pred_region
          %s430 = sand.u32 %s54, 1
          %s431 = scalar_lea.sflag [#allocation9], %s430
          %s432 = sand.u32 %s54, 1
          %s433 = smul.addr %s432, 8
          %s434 = scalar_lea.vmem [#allocation8], %s433
          %435 = dma.done %s431, 128
        $region56: #{tpu_custom_call.1} parent=51 // pred_fallthru
          _
      $region52: #{tpu_custom_call.1} parent=5 // pred_fallthru
        _
    $region6: #{tpu_custom_call.1} parent=1 // loop_footer
      %s34 = sadd.s32 1, %s30
    $region7: #{tpu_custom_call.1} parent=1 // loop_footer_branch
      %29 = sbr.rel target = $region3
    $region8: #{tpu_custom_call.1} parent=1 // loop_exit
      _
    %436 = vsyncpa [#allocation9], 1
    %s437 = scalar_lea.sflag [#allocation9], 1
    %438 = vsyncpa %s437, 1
  %439 = vsyncmov [#allocation2]
  %s440 = vpop.sfrf %439
  %p441 = scmp.eq.s32.totalorder %s440, 0
  %p442 = pneg %p441
  %444 = shalt.err (%p442)
  %s445 = scalar_lea.sflag [#allocation2], 1
  %446 = vsyncmov %s445
  %s447 = vpop.sfrf %446
  %p448 = scmp.eq.s32.totalorder %s447, 0
  %p449 = pneg %p448
  %451 = shalt.err (%p449)
  %s452 = scalar_lea.sflag [#allocation2], 2
  %453 = vsyncmov %s452
  %s454 = vpop.sfrf %453
  %p455 = scmp.eq.s32.totalorder %s454, 0
  %p456 = pneg %p455
  %458 = shalt.err (%p456)
  %s459 = scalar_lea.sflag [#allocation2], 3
  %460 = vsyncmov %s459
  %s461 = vpop.sfrf %460
  %p462 = scmp.eq.s32.totalorder %s461, 0
  %p463 = pneg %p462
  %465 = shalt.err (%p463)
  %s466 = scalar_lea.sflag [#allocation2], 4
  %467 = vsyncmov %s466
  %s468 = vpop.sfrf %467
  %p469 = scmp.eq.s32.totalorder %s468, 0
  %p470 = pneg %p469
  %472 = shalt.err (%p470)
  %s473 = scalar_lea.sflag [#allocation2], 5
  %474 = vsyncmov %s473
  %s475 = vpop.sfrf %474
  %p476 = scmp.eq.s32.totalorder %s475, 0
  %p477 = pneg %p476
  %479 = shalt.err (%p477)
  %s480 = scalar_lea.sflag [#allocation2], 6
  %481 = vsyncmov %s480
  %s482 = vpop.sfrf %481
  %p483 = scmp.eq.s32.totalorder %s482, 0
  %p484 = pneg %p483
  %486 = shalt.err (%p484)
  %s487 = scalar_lea.sflag [#allocation2], 7
  %488 = vsyncmov %s487
  %s489 = vpop.sfrf %488
  %p490 = scmp.eq.s32.totalorder %s489, 0
  %p491 = pneg %p490
  %493 = shalt.err (%p491)

</llo_original>
